<compile_context>
chip_gen: v5e
topology: v5e:2x2
jax: 0.10.0
libtpu: 0.0.40
codegen_flags: <defaults>
</compile_context>

<pallas_src>
import jax
import jax.numpy as jnp
from jax.experimental import pallas as pl
from jax.experimental.pallas import tpu as pltpu


def _round_up(x, m):
    return ((x + m - 1) // m) * m


# -----------------------------------------------------------------------------
# Fused kernel: one grid step = one block of batch rows; all taps & filter banks.
# -----------------------------------------------------------------------------
def _charcnn_kernel(ids_ref, w_ref, b_ref, o_ref):
    """ids_ref: (bb*L, max_w) int32  time-shifted char ids (sentinel = num_chars)
       w_ref  : (max_w, V+1, f_pad)  embedding-folded conv weights, all banks
       b_ref  : (1, f_pad)           lane-padded biases
       o_ref  : (bb, f_pad)          pooled + ReLU'd features (lane-dense store)
    """
    m, max_w = ids_ref.shape
    vocab_p = w_ref.shape[1]
    bb, f_pad = o_ref.shape
    seq_len = m // bb

    ids = ids_ref[...]                                               # (m, max_w)
    iota_v = jax.lax.broadcasted_iota(jnp.int32, (m, vocab_p), 1)

    # acc[b*L + t, f] = sum_k fused_w[k][ ids[b, t+k], f ]
    # (batch, time) collapsed into M -> one full-height MXU matmul per tap;
    # every filter bank lives at its own lane offset of the 128-wide F axis.
    acc = jnp.zeros((m, f_pad), jnp.float32)
    for k in range(max_w):
        onehot = (ids[:, k:k + 1] == iota_v).astype(jnp.float32)     # (m, V+1)
        acc = acc + jnp.dot(onehot, w_ref[k],
                            preferred_element_type=jnp.float32)      # (m, f_pad)

    # Past-the-end taps hit the sentinel weight row (-1e30), so the max over time
    # ignores invalid positions exactly.  Bias after the max is exact (bias is
    # time-invariant); ReLU last; foreign pad lanes stay 0 and are sliced off
    # by the wrapper.
    acc = acc.reshape(bb, seq_len, f_pad)                            # free split
    pooled = jnp.max(acc, axis=1)                                    # (bb, f_pad)
    o_ref[...] = jnp.maximum(pooled + b_ref[...], 0.0).astype(o_ref.dtype)


def _charcnn_pallas(ids_taps, fused_w, bias_pad, *, batch, seq_len, block_cap=32):
    _, max_w = ids_taps.shape
    _, vocab_p, f_pad = fused_w.shape

    if batch <= 8:
        bb = batch                         # full dim: always layout-legal
    else:
        # multiple of 8, capped; aim for >= 2 grid steps so both v7x TCs get work
        bb = min(block_cap, _round_up(pl.cdiv(batch, 2), 8))
    grid = (pl.cdiv(batch, bb),)

    # Advisory cost estimate (counts the lane/vocab padding; advisory only).
    flops = 2 * batch * seq_len * vocab_p * f_pad * max_w
    bytes_accessed = 4 * (ids_taps.size + fused_w.size + bias_pad.size
                          + batch * f_pad)

    return pl.pallas_call(
        _charcnn_kernel,
        out_shape=jax.ShapeDtypeStruct((batch, f_pad), jnp.float32),
        grid=grid,
        in_specs=[
            # time-shifted ids: rows are (batch, time) collapsed, batch-major,
            # so block g covers exactly batch rows [g*bb, (g+1)*bb).
            pl.BlockSpec((bb * seq_len, max_w), lambda g: (g, 0)),
            pl.BlockSpec((max_w, vocab_p, f_pad), lambda g: (0, 0, 0)),
            pl.BlockSpec((1, f_pad), lambda g: (0, 0)),
        ],
        out_specs=pl.BlockSpec((bb, f_pad), lambda g: (g, 0)),
        compiler_params=pltpu.CompilerParams(
            dimension_semantics=("parallel",)),
        cost_estimate=pl.CostEstimate(flops=int(flops), transcendentals=0,
                                      bytes_accessed=int(bytes_accessed)),
    )(ids_taps, fused_w, bias_pad)


# -----------------------------------------------------------------------------
# Parameter setup + forward wrapper
# -----------------------------------------------------------------------------
def make_charcnn(key, num_chars, num_channels, filters):
    """Returns (params, forward). forward(params, int ids (B, L)) -> (B, sum F)."""
    filters = tuple((int(w), int(f)) for w, f in filters)
    max_w = max(w for w, _ in filters)
    f_total = sum(f for _, f in filters)
    # Lane-dense output width.  (If f_total ever exceeds 128, prefer multiples of
    # 256 on v6e/v7x -- their MXUs are 256 wide; 128-multiples are ideal on v5e.)
    f_pad = max(128, _round_up(f_total, 128))
    vocab_p = num_chars + 1                  # +1 sentinel row for past-the-end taps
    neg_big = -1e30

    params = {}
    key, ek = jax.random.split(key)
    # nn.Embedding default init: N(0, 1)
    embedding = jax.random.normal(ek, (num_chars, num_channels), dtype=jnp.float32)
    params["embedding"] = embedding

    # Embedding-folded, bank-merged, lane-padded conv weights:
    #   fused_w[k][v, f] = sum_c E[v, c] * W_bank(f)[k][c, f]   (zero if k >= width)
    #   fused_w[k][V, f] = -1e30 for banks with width > k (sentinel row)
    fused_w = jnp.zeros((max_w, vocab_p, f_pad), jnp.float32)
    bias_pad = jnp.zeros((1, f_pad), jnp.float32)
    conv_w_raw, conv_b_raw = [], []
    off = 0
    for (width, num_f) in filters:
        key, wk, bk = jax.random.split(key, 3)
        bound = 1.0 / float(num_channels * width) ** 0.5            # Conv1d default init
        w_torch = jax.random.uniform(wk, (num_f, num_channels, width),
                                     jnp.float32, -bound, bound)    # (F, C, width)
        bias = jax.random.uniform(bk, (num_f,), jnp.float32, -bound, bound)
        w = jnp.transpose(w_torch, (2, 1, 0))                       # (width, C, F)
        conv_w_raw.append(w)
        conv_b_raw.append(bias)
        for k in range(width):
            fw = jnp.dot(embedding, w[k],
                         precision=jax.lax.Precision.HIGHEST)       # (V, F_i)
            fused_w = fused_w.at[k, :num_chars, off:off + num_f].set(fw)
            fused_w = fused_w.at[k, num_chars, off:off + num_f].set(neg_big)
        bias_pad = bias_pad.at[0, off:off + num_f].set(bias)
        off += num_f

    params["fused_w"] = fused_w                 # NOTE: recompute if weights train
    params["bias_pad"] = bias_pad
    params["conv_w_raw"] = conv_w_raw           # unfused copies: reference check only
    params["conv_b_raw"] = conv_b_raw

    def forward(p, inputs):
        ids = inputs.astype(jnp.int32)                              # (B, L) compact
        batch, seq_len = ids.shape
        assert seq_len >= max_w, "sequence shorter than the widest filter"
        # Per-tap time-shifted ids, (batch, time) collapsed batch-major so the
        # kernel never slices/rolls along time; positions past the end get the
        # sentinel id (num_chars) -> sentinel weight row -> masked by the max.
        taps = [jnp.pad(ids[:, k:], ((0, 0), (0, k)), constant_values=num_chars)
                for k in range(max_w)]
        ids_taps = jnp.stack(taps, axis=-1).reshape(batch * seq_len, max_w)
        out_padded = _charcnn_pallas(ids_taps, p["fused_w"], p["bias_pad"],
                                     batch=batch, seq_len=seq_len)
        return out_padded[:, :f_total]

    return params, jax.jit(forward)


# Pure-JAX reference (mirrors the PyTorch forward) for the correctness check.
def charcnn_reference(params, inputs, filters):
    emb = jnp.take(params["embedding"], inputs.astype(jnp.int32), axis=0)  # (B, L, C)
    outs = []
    for (width, num_f), w, b in zip(filters, params["conv_w_raw"],
                                    params["conv_b_raw"]):
        seq_len = emb.shape[1]
        lout = seq_len - width + 1
        acc = jnp.zeros((emb.shape[0], lout, num_f), jnp.float32)
        for k in range(width):
            acc = acc + jnp.einsum("blc,cf->blf", emb[:, k:k + lout, :], w[k],
                                   precision=jax.lax.Precision.HIGHEST)
        acc = acc + b[None, None, :]
        outs.append(jnp.maximum(jnp.max(acc, axis=1), 0.0))
    return jnp.concatenate(outs, axis=-1)


if __name__ == "__main__":
    num_chars = 32
    num_channels = 8
    filters = [(2, 8), (3, 16), (4, 16)]     # (kernel_width, num_filters)
    batch, seq_len = 2, 16

    key = jax.random.PRNGKey(0)
    pkey, ikey = jax.random.split(key)
    params, forward = make_charcnn(pkey, num_chars, num_channels, filters)
    inputs = jax.random.randint(ikey, (batch, seq_len), 0, num_chars,
                                dtype=jnp.int32)

    out = jax.block_until_ready(forward(params, inputs))
    ref = jax.block_until_ready(charcnn_reference(params, inputs, filters))

    assert out.shape == (batch, sum(f for _, f in filters)), out.shape
    assert jnp.allclose(out, ref, atol=1e-5, rtol=1e-5), "mismatch vs reference"
    print("KERNEL_OK")
</pallas_src>

<mosaic_0001>
module attributes {stable_mosaic.version = 11 : i64} {
  func.func @_charcnn_kernel(%arg0: i32, %arg1: memref<32x4xi32, #tpu.memory_space<vmem>>, %arg2: memref<4x33x128xf32, #tpu.memory_space<vmem>>, %arg3: memref<1x128xf32, #tpu.memory_space<vmem>>, %arg4: memref<2x128xf32, #tpu.memory_space<vmem>>) attributes {dimension_semantics = [#tpu.dimension_semantics<parallel>], iteration_bounds = array<i64: 1>, scalar_prefetch = 0 : i64, scratch_operands = 0 : i64, tpu.core_type = #tpu.core_type<tc>, window_params = [{transform_indices = @transform_0, window_bounds = array<i64: 32, 4>}, {pipeline_mode = #tpu.pipeline_mode<synchronous>, transform_indices = @transform_1, window_bounds = array<i64: 4, 33, 128>}, {pipeline_mode = #tpu.pipeline_mode<synchronous>, transform_indices = @transform_2, window_bounds = array<i64: 1, 128>}, {transform_indices = @transform_3, window_bounds = array<i64: 2, 128>}]} {
    %c0 = arith.constant 0 : index
    %c0_0 = arith.constant 0 : index
    %0 = vector.load %arg1[%c0, %c0_0] : memref<32x4xi32, #tpu.memory_space<vmem>>, vector<32x4xi32>
    %1 = tpu.iota {dimensions = array<i32: 1>} : vector<32x33xi32>
    %cst = arith.constant 0.000000e+00 : f32
    %2 = vector.broadcast %cst : f32 to vector<32x128xf32>
    %3 = vector.extract_strided_slice %0 {offsets = [0, 0], sizes = [32, 1], strides = [1, 1]} : vector<32x4xi32> to vector<32x1xi32>
    %4 = vector.broadcast %3 : vector<32x1xi32> to vector<32x33xi32>
    %5 = arith.cmpi eq, %4, %1 : vector<32x33xi32>
    %6 = arith.extui %5 : vector<32x33xi1> to vector<32x33xi32>
    %7 = arith.sitofp %6 : vector<32x33xi32> to vector<32x33xf32>
    %c0_1 = arith.constant 0 : index
    %c0_2 = arith.constant 0 : index
    %c0_3 = arith.constant 0 : index
    %8 = vector.load %arg2[%c0_1, %c0_2, %c0_3] : memref<4x33x128xf32, #tpu.memory_space<vmem>>, vector<1x33x128xf32>
    %9 = vector.shape_cast %8 : vector<1x33x128xf32> to vector<33x128xf32>
    %cst_4 = arith.constant dense<0.000000e+00> : vector<32x128xf32>
    %10 = tpu.matmul %7, %9, %cst_4 {dimension_numbers = #tpu.dot_dimension_numbers<[1], [0], [0], [1], [0, 0, 1, 1], [], []>} : vector<32x33xf32>, vector<33x128xf32>, vector<32x128xf32> -> vector<32x128xf32>
    %11 = arith.addf %2, %10 : vector<32x128xf32>
    %12 = vector.extract_strided_slice %0 {offsets = [0, 1], sizes = [32, 1], strides = [1, 1]} : vector<32x4xi32> to vector<32x1xi32>
    %13 = vector.broadcast %12 : vector<32x1xi32> to vector<32x33xi32>
    %14 = arith.cmpi eq, %13, %1 : vector<32x33xi32>
    %15 = arith.extui %14 : vector<32x33xi1> to vector<32x33xi32>
    %16 = arith.sitofp %15 : vector<32x33xi32> to vector<32x33xf32>
    %c1 = arith.constant 1 : index
    %c0_5 = arith.constant 0 : index
    %c0_6 = arith.constant 0 : index
    %17 = vector.load %arg2[%c1, %c0_5, %c0_6] : memref<4x33x128xf32, #tpu.memory_space<vmem>>, vector<1x33x128xf32>
    %18 = vector.shape_cast %17 : vector<1x33x128xf32> to vector<33x128xf32>
    %cst_7 = arith.constant dense<0.000000e+00> : vector<32x128xf32>
    %19 = tpu.matmul %16, %18, %cst_7 {dimension_numbers = #tpu.dot_dimension_numbers<[1], [0], [0], [1], [0, 0, 1, 1], [], []>} : vector<32x33xf32>, vector<33x128xf32>, vector<32x128xf32> -> vector<32x128xf32>
    %20 = arith.addf %11, %19 : vector<32x128xf32>
    %21 = vector.extract_strided_slice %0 {offsets = [0, 2], sizes = [32, 1], strides = [1, 1]} : vector<32x4xi32> to vector<32x1xi32>
    %22 = vector.broadcast %21 : vector<32x1xi32> to vector<32x33xi32>
    %23 = arith.cmpi eq, %22, %1 : vector<32x33xi32>
    %24 = arith.extui %23 : vector<32x33xi1> to vector<32x33xi32>
    %25 = arith.sitofp %24 : vector<32x33xi32> to vector<32x33xf32>
    %c2 = arith.constant 2 : index
    %c0_8 = arith.constant 0 : index
    %c0_9 = arith.constant 0 : index
    %26 = vector.load %arg2[%c2, %c0_8, %c0_9] : memref<4x33x128xf32, #tpu.memory_space<vmem>>, vector<1x33x128xf32>
    %27 = vector.shape_cast %26 : vector<1x33x128xf32> to vector<33x128xf32>
    %cst_10 = arith.constant dense<0.000000e+00> : vector<32x128xf32>
    %28 = tpu.matmul %25, %27, %cst_10 {dimension_numbers = #tpu.dot_dimension_numbers<[1], [0], [0], [1], [0, 0, 1, 1], [], []>} : vector<32x33xf32>, vector<33x128xf32>, vector<32x128xf32> -> vector<32x128xf32>
    %29 = arith.addf %20, %28 : vector<32x128xf32>
    %30 = vector.extract_strided_slice %0 {offsets = [0, 3], sizes = [32, 1], strides = [1, 1]} : vector<32x4xi32> to vector<32x1xi32>
    %31 = vector.broadcast %30 : vector<32x1xi32> to vector<32x33xi32>
    %32 = arith.cmpi eq, %31, %1 : vector<32x33xi32>
    %33 = arith.extui %32 : vector<32x33xi1> to vector<32x33xi32>
    %34 = arith.sitofp %33 : vector<32x33xi32> to vector<32x33xf32>
    %c3 = arith.constant 3 : index
    %c0_11 = arith.constant 0 : index
    %c0_12 = arith.constant 0 : index
    %35 = vector.load %arg2[%c3, %c0_11, %c0_12] : memref<4x33x128xf32, #tpu.memory_space<vmem>>, vector<1x33x128xf32>
    %36 = vector.shape_cast %35 : vector<1x33x128xf32> to vector<33x128xf32>
    %cst_13 = arith.constant dense<0.000000e+00> : vector<32x128xf32>
    %37 = tpu.matmul %34, %36, %cst_13 {dimension_numbers = #tpu.dot_dimension_numbers<[1], [0], [0], [1], [0, 0, 1, 1], [], []>} : vector<32x33xf32>, vector<33x128xf32>, vector<32x128xf32> -> vector<32x128xf32>
    %38 = arith.addf %29, %37 : vector<32x128xf32>
    %39 = vector.shape_cast %38 : vector<32x128xf32> to vector<2x16x128xf32>
    %cst_14 = arith.constant dense<0xFF800000> : vector<2x128xf32>
    %40 = vector.multi_reduction <maximumf>, %39, %cst_14 [1] : vector<2x16x128xf32> to vector<2x128xf32>
    %c0_15 = arith.constant 0 : index
    %c0_16 = arith.constant 0 : index
    %41 = vector.load %arg3[%c0_15, %c0_16] : memref<1x128xf32, #tpu.memory_space<vmem>>, vector<1x128xf32>
    %42 = vector.broadcast %41 : vector<1x128xf32> to vector<2x128xf32>
    %43 = arith.addf %40, %42 : vector<2x128xf32>
    %cst_17 = arith.constant 0.000000e+00 : f32
    %44 = vector.broadcast %cst_17 : f32 to vector<2x128xf32>
    %45 = arith.maximumf %43, %44 : vector<2x128xf32>
    %c0_18 = arith.constant 0 : index
    %c0_19 = arith.constant 0 : index
    %46 = vector.load %arg4[%c0_18, %c0_19] : memref<2x128xf32, #tpu.memory_space<vmem>>, vector<2x128xf32>
    tpu.vector_store %arg4[%c0_18, %c0_19], %45 {strides = array<i32>} : memref<2x128xf32, #tpu.memory_space<vmem>>, vector<2x128xf32>,
    return
  }
  func.func @transform_0(%arg0: i32) -> (i32, i32) {
    %c0_i32 = arith.constant 0 : i32
    %c0_i32_0 = arith.constant 0 : i32
    return %arg0, %c0_i32 : i32, i32
  }
  func.func @transform_1(%arg0: i32) -> (i32, i32, i32) {
    %c0_i32 = arith.constant 0 : i32
    %c0_i32_0 = arith.constant 0 : i32
    %c0_i32_1 = arith.constant 0 : i32
    %c0_i32_2 = arith.constant 0 : i32
    return %c0_i32, %c0_i32_0, %c0_i32_1 : i32, i32, i32
  }
  func.func @transform_2(%arg0: i32) -> (i32, i32) {
    %c0_i32 = arith.constant 0 : i32
    %c0_i32_0 = arith.constant 0 : i32
    %c0_i32_1 = arith.constant 0 : i32
    return %c0_i32, %c0_i32_0 : i32, i32
  }
  func.func @transform_3(%arg0: i32) -> (i32, i32) {
    %c0_i32 = arith.constant 0 : i32
    %c0_i32_0 = arith.constant 0 : i32
    return %arg0, %c0_i32 : i32, i32
  }
}

</mosaic_0001>

<llo_original>
// kernel: forward.1
$region0: #{forward.1}
  #allocation0 [shape = 'u32[]', space=smem, size = 0x4, offset = 0x4, fixed_abs, tag = 'smem constant byte address 0x4 - core index']
  #allocation1 [shape = 'u32[72,128]{1,0:T(1,128)}', space=vmem, size = 0x9000, scoped, tag = 'internal scratch']
  %s0 = inlined_call_operand.vmem [shape: s32[32,4], index: 0, kind: input, shape index: {}]
  %s1 = inlined_call_operand.vmem [shape: f32[4,33,128], index: 1, kind: input, shape index: {}]
  %s2 = inlined_call_operand.vmem [shape: f32[1,128], index: 2, kind: input, shape index: {}]
  %s3 = inlined_call_operand.hbm [shape: f32[2,128], index: 3, kind: output, shape index: {}]
  %s4 = sld [smem:[#allocation0]]
  $region22: #{forward.1} parent=0
    _
  %s6 = ssub.s32 1, %s4
  %s7 = scalar_select 0, %s6, %s4
  $region1: #{forward.1} parent=0
    #allocation2 [shape = 'u8[1024]{0}', space=vmem, size = 0x400, scoped, tag = 'output window, operand 0, single buffered']
    #allocation3 [shape = 's32[1]{0}', space=sflag, size = 0x4, scoped, tag = 'scoped memory for forward.1']
    %8 = vsyncpa [#allocation3], 0
    // Predicated region
    $region2: #{forward.1} parent=1 // pred_check
      _
    $region3: #{forward.1} parent=1 // pred_check_branch
      %10 = sbr.rel (0) target = $region5
    $region4: #{forward.1} parent=1 // pred_region
      _
    $region5: #{forward.1} parent=1 // pred_fallthru
      _
    // Predicated region
    $region6: #{forward.1} parent=1 // pred_check
      _
    $region7: #{forward.1} parent=1 // pred_check_branch
      %12 = sbr.rel (0) target = $region9
    $region8: #{forward.1} parent=1 // pred_region
      _
    $region9: #{forward.1} parent=1 // pred_fallthru
      _
    // Predicated region
    $region10: #{forward.1} parent=1 // pred_check
      _
    $region11: #{forward.1} parent=1 // pred_check_branch
      %14 = sbr.rel (0) target = $region13
    $region12: #{forward.1} parent=1 // pred_region
      _
    $region13: #{forward.1} parent=1 // pred_fallthru
      _
    %v15 = vld [vmem:[%s0] sm:$0xff]
    %v16 = vld [vmem:[%s0 + $0x8] sm:$0xff]
    %v17 = vld [vmem:[%s0 + $0x10] sm:$0xff]
    %v18 = vld [vmem:[%s0 + $0x18] sm:$0xff]
    %v19 = vlaneseq
    %v20 = vand.u32 %v19, 127
    %21 = vset.pattern.permute.xlu0 0
    %22 = vperm.xlu0 %21, %v15
    %v23 = vpop.permute.xlu0 %22
    %24 = vset.pattern.permute.xlu0 0
    %25 = vperm.xlu0 %24, %v16
    %v26 = vpop.permute.xlu0 %25
    %27 = vset.pattern.permute.xlu0 0
    %28 = vperm.xlu0 %27, %v17
    %v29 = vpop.permute.xlu0 %28
    %30 = vset.pattern.permute.xlu0 0
    %31 = vperm.xlu0 %30, %v18
    %v32 = vpop.permute.xlu0 %31
    %vm33 = vcmp.eq.s32.totalorder %v23, %v20
    %vm34 = vcmp.eq.s32.totalorder %v26, %v20
    %vm35 = vcmp.eq.s32.totalorder %v29, %v20
    %vm36 = vcmp.eq.s32.totalorder %v32, %v20
    %v37 = vsel %vm33, 1, 0
    %v38 = vsel %vm34, 1, 0
    %v39 = vsel %vm35, 1, 0
    %v40 = vsel %vm36, 1, 0
    %v41 = vcvt.s32.f32 %v37
    %v42 = vcvt.s32.f32 %v38
    %v43 = vcvt.s32.f32 %v39
    %v44 = vcvt.s32.f32 %v40
    %v45 = vld [vmem:[%s1] sm:$0xff]
    %v46 = vld [vmem:[%s1 + $0x8] sm:$0xff]
    %v47 = vld [vmem:[%s1 + $0x10] sm:$0xff]
    %v48 = vld [vmem:[%s1 + $0x18] sm:$0xff]
    %v49 = vld [vmem:[%s1 + $0x20] sm:$0x1]
    %50 = vset.pattern.permute.xlu0 1
    %51 = vperm.xlu0 %50, %v15
    %v52 = vpop.permute.xlu0 %51
    %53 = vset.pattern.permute.xlu0 1
    %54 = vperm.xlu0 %53, %v16
    %v55 = vpop.permute.xlu0 %54
    %56 = vset.pattern.permute.xlu0 1
    %57 = vperm.xlu0 %56, %v17
    %v58 = vpop.permute.xlu0 %57
    %59 = vset.pattern.permute.xlu0 1
    %60 = vperm.xlu0 %59, %v18
    %v61 = vpop.permute.xlu0 %60
    %vm62 = vcmp.eq.s32.totalorder %v52, %v20
    %vm63 = vcmp.eq.s32.totalorder %v55, %v20
    %vm64 = vcmp.eq.s32.totalorder %v58, %v20
    %vm65 = vcmp.eq.s32.totalorder %v61, %v20
    %v66 = vsel %vm62, 1, 0
    %v67 = vsel %vm63, 1, 0
    %v68 = vsel %vm64, 1, 0
    %v69 = vsel %vm65, 1, 0
    %v70 = vcvt.s32.f32 %v66
    %v71 = vcvt.s32.f32 %v67
    %v72 = vcvt.s32.f32 %v68
    %v73 = vcvt.s32.f32 %v69
    %s74 = scalar_lea.vmem %s1, 40
    %v75 = vld [vmem:[%s74] sm:$0xff]
    %v76 = vld [vmem:[%s74 + $0x8] sm:$0xff]
    %v77 = vld [vmem:[%s74 + $0x10] sm:$0xff]
    %v78 = vld [vmem:[%s74 + $0x18] sm:$0xff]
    %v79 = vld [vmem:[%s74 + $0x20] sm:$0x1]
    %vm80 = vcmask 269312
    %v82 = vsel %vm80, %v70, 0
    %v85 = vsel %vm80, %v71, 0
    %v88 = vsel %vm80, %v72, 0
    %v91 = vsel %vm80, %v73, 0
    %vm93 = vcmask 1040384
    %v95 = vsel %vm93, %v79, 0
    %97 = vmatpush.msra.mxu0 0.0
    %98 = vmatpush.msra.mxu0 0.0
    %99 = vmatpush.msra.mxu0 0.0
    %100 = vmatpush.msra.mxu0 0.0
    %101 = vmatpush.msra.mxu0 0.0
    %102 = vmatpush.msra.mxu0 0.0
    %103 = vmatpush.msra.mxu0 0.0
    %104 = vmatpush.msra.mxu0 0.0
    %105 = vmatpush.msra.mxu0 0.0
    %106 = vmatpush.msra.mxu0 0.0
    %107 = vmatpush.msra.mxu0 0.0
    %108 = vmatpush.msra.mxu0 %v95
    %109 = vmatpush.msra.mxu0 %v78
    %110 = vmatpush.msra.mxu0 %v77
    %111 = vmatpush.msra.mxu0 %v76
    %112 = vmatpush.msra.mxu0 %v75
    %113 = vmatmul.f32.gmra.mxu0 %v82
    %v114 = vpop.f32.mrf.mxu0
    %v115 = vadd.f32 0.0, %v114
    %116 = vmatmul.f32.gmra.mxu0 %v85
    %v117 = vpop.f32.mrf.mxu0
    %v118 = vadd.f32 0.0, %v117
    %119 = vmatmul.f32.gmra.mxu0 %v88
    %v120 = vpop.f32.mrf.mxu0
    %v121 = vadd.f32 0.0, %v120
    %122 = vmatmul.f32.gmra.mxu0 %v91
    %v123 = vpop.f32.mrf.mxu0
    %v124 = vadd.f32 0.0, %v123
    %125 = vdwg.mxu0
    %v127 = vsel %vm80, %v41, 0
    %v130 = vsel %vm80, %v42, 0
    %v133 = vsel %vm80, %v43, 0
    %v136 = vsel %vm80, %v44, 0
    %v139 = vsel %vm93, %v49, 0
    %141 = vmatpush.msra.mxu0 0.0
    %142 = vmatpush.msra.mxu0 0.0
    %143 = vmatpush.msra.mxu0 0.0
    %144 = vmatpush.msra.mxu0 0.0
    %145 = vmatpush.msra.mxu0 0.0
    %146 = vmatpush.msra.mxu0 0.0
    %147 = vmatpush.msra.mxu0 0.0
    %148 = vmatpush.msra.mxu0 0.0
    %149 = vmatpush.msra.mxu0 0.0
    %150 = vmatpush.msra.mxu0 0.0
    %151 = vmatpush.msra.mxu0 0.0
    %152 = vmatpush.msra.mxu0 %v139
    %153 = vmatpush.msra.mxu0 %v48
    %154 = vmatpush.msra.mxu0 %v47
    %155 = vmatpush.msra.mxu0 %v46
    %156 = vmatpush.msra.mxu0 %v45
    %157 = vmatmul.f32.gmra.mxu0 %v127
    %v158 = vpop.f32.mrf.mxu0
    %v159 = vadd.f32 %v115, %v158
    %160 = vmatmul.f32.gmra.mxu0 %v130
    %v161 = vpop.f32.mrf.mxu0
    %v162 = vadd.f32 %v118, %v161
    %163 = vmatmul.f32.gmra.mxu0 %v133
    %v164 = vpop.f32.mrf.mxu0
    %v165 = vadd.f32 %v121, %v164
    %166 = vmatmul.f32.gmra.mxu0 %v136
    %v167 = vpop.f32.mrf.mxu0
    %v168 = vadd.f32 %v124, %v167
    %169 = vdwg.mxu0
    %170 = vset.pattern.permute.xlu0 2
    %171 = vperm.xlu0 %170, %v15
    %v172 = vpop.permute.xlu0 %171
    %173 = vset.pattern.permute.xlu0 2
    %174 = vperm.xlu0 %173, %v16
    %v175 = vpop.permute.xlu0 %174
    %176 = vset.pattern.permute.xlu0 2
    %177 = vperm.xlu0 %176, %v17
    %v178 = vpop.permute.xlu0 %177
    %179 = vset.pattern.permute.xlu0 2
    %180 = vperm.xlu0 %179, %v18
    %v181 = vpop.permute.xlu0 %180
    %vm182 = vcmp.eq.s32.totalorder %v172, %v20
    %vm183 = vcmp.eq.s32.totalorder %v175, %v20
    %vm184 = vcmp.eq.s32.totalorder %v178, %v20
    %vm185 = vcmp.eq.s32.totalorder %v181, %v20
    %v186 = vsel %vm182, 1, 0
    %v187 = vsel %vm183, 1, 0
    %v188 = vsel %vm184, 1, 0
    %v189 = vsel %vm185, 1, 0
    %v190 = vcvt.s32.f32 %v186
    %v191 = vcvt.s32.f32 %v187
    %v192 = vcvt.s32.f32 %v188
    %v193 = vcvt.s32.f32 %v189
    %s194 = scalar_lea.vmem %s1, 80
    %v195 = vld [vmem:[%s194] sm:$0xff]
    %v196 = vld [vmem:[%s194 + $0x8] sm:$0xff]
    %v197 = vld [vmem:[%s194 + $0x10] sm:$0xff]
    %v198 = vld [vmem:[%s194 + $0x18] sm:$0xff]
    %v199 = vld [vmem:[%s194 + $0x20] sm:$0x1]
    %v201 = vsel %vm80, %v190, 0
    %v204 = vsel %vm80, %v191, 0
    %v207 = vsel %vm80, %v192, 0
    %v210 = vsel %vm80, %v193, 0
    %v213 = vsel %vm93, %v199, 0
    %215 = vmatpush.msra.mxu0 0.0
    %216 = vmatpush.msra.mxu0 0.0
    %217 = vmatpush.msra.mxu0 0.0
    %218 = vmatpush.msra.mxu0 0.0
    %219 = vmatpush.msra.mxu0 0.0
    %220 = vmatpush.msra.mxu0 0.0
    %221 = vmatpush.msra.mxu0 0.0
    %222 = vmatpush.msra.mxu0 0.0
    %223 = vmatpush.msra.mxu0 0.0
    %224 = vmatpush.msra.mxu0 0.0
    %225 = vmatpush.msra.mxu0 0.0
    %226 = vmatpush.msra.mxu0 %v213
    %227 = vmatpush.msra.mxu0 %v198
    %228 = vmatpush.msra.mxu0 %v197
    %229 = vmatpush.msra.mxu0 %v196
    %230 = vmatpush.msra.mxu0 %v195
    %231 = vmatmul.f32.gmra.mxu0 %v201
    %v232 = vpop.f32.mrf.mxu0
    %v233 = vadd.f32 0.0, %v232
    %234 = vmatmul.f32.gmra.mxu0 %v204
    %v235 = vpop.f32.mrf.mxu0
    %v236 = vadd.f32 0.0, %v235
    %237 = vmatmul.f32.gmra.mxu0 %v207
    %v238 = vpop.f32.mrf.mxu0
    %v239 = vadd.f32 0.0, %v238
    %240 = vmatmul.f32.gmra.mxu0 %v210
    %v241 = vpop.f32.mrf.mxu0
    %v242 = vadd.f32 0.0, %v241
    %243 = vdwg.mxu0
    %v244 = vadd.f32 %v159, %v233
    %v245 = vadd.f32 %v162, %v236
    %v246 = vadd.f32 %v165, %v239
    %v247 = vadd.f32 %v168, %v242
    %248 = vset.pattern.permute.xlu0 3
    %249 = vperm.xlu0 %248, %v15
    %v250 = vpop.permute.xlu0 %249
    %251 = vset.pattern.permute.xlu0 3
    %252 = vperm.xlu0 %251, %v16
    %v253 = vpop.permute.xlu0 %252
    %254 = vset.pattern.permute.xlu0 3
    %255 = vperm.xlu0 %254, %v17
    %v256 = vpop.permute.xlu0 %255
    %257 = vset.pattern.permute.xlu0 3
    %258 = vperm.xlu0 %257, %v18
    %v259 = vpop.permute.xlu0 %258
    %vm260 = vcmp.eq.s32.totalorder %v250, %v20
    %vm261 = vcmp.eq.s32.totalorder %v253, %v20
    %vm262 = vcmp.eq.s32.totalorder %v256, %v20
    %vm263 = vcmp.eq.s32.totalorder %v259, %v20
    %v264 = vsel %vm260, 1, 0
    %v265 = vsel %vm261, 1, 0
    %v266 = vsel %vm262, 1, 0
    %v267 = vsel %vm263, 1, 0
    %v268 = vcvt.s32.f32 %v264
    %v269 = vcvt.s32.f32 %v265
    %v270 = vcvt.s32.f32 %v266
    %v271 = vcvt.s32.f32 %v267
    %s272 = scalar_lea.vmem %s1, 120
    %v273 = vld [vmem:[%s272] sm:$0xff]
    %v274 = vld [vmem:[%s272 + $0x8] sm:$0xff]
    %v275 = vld [vmem:[%s272 + $0x10] sm:$0xff]
    %v276 = vld [vmem:[%s272 + $0x18] sm:$0xff]
    %v277 = vld [vmem:[%s272 + $0x20] sm:$0x1]
    %v279 = vsel %vm80, %v268, 0
    %v282 = vsel %vm80, %v269, 0
    %v285 = vsel %vm80, %v270, 0
    %v288 = vsel %vm80, %v271, 0
    %v291 = vsel %vm93, %v277, 0
    %293 = vmatpush.msra.mxu0 0.0
    %294 = vmatpush.msra.mxu0 0.0
    %295 = vmatpush.msra.mxu0 0.0
    %296 = vmatpush.msra.mxu0 0.0
    %297 = vmatpush.msra.mxu0 0.0
    %298 = vmatpush.msra.mxu0 0.0
    %299 = vmatpush.msra.mxu0 0.0
    %300 = vmatpush.msra.mxu0 0.0
    %301 = vmatpush.msra.mxu0 0.0
    %302 = vmatpush.msra.mxu0 0.0
    %303 = vmatpush.msra.mxu0 0.0
    %304 = vmatpush.msra.mxu0 %v291
    %305 = vmatpush.msra.mxu0 %v276
    %306 = vmatpush.msra.mxu0 %v275
    %307 = vmatpush.msra.mxu0 %v274
    %308 = vmatpush.msra.mxu0 %v273
    %309 = vmatmul.f32.gmra.mxu0 %v279
    %v310 = vpop.f32.mrf.mxu0
    %v311 = vadd.f32 0.0, %v310
    %312 = vmatmul.f32.gmra.mxu0 %v282
    %v313 = vpop.f32.mrf.mxu0
    %v314 = vadd.f32 0.0, %v313
    %315 = vmatmul.f32.gmra.mxu0 %v285
    %v316 = vpop.f32.mrf.mxu0
    %v317 = vadd.f32 0.0, %v316
    %318 = vmatmul.f32.gmra.mxu0 %v288
    %v319 = vpop.f32.mrf.mxu0
    %v320 = vadd.f32 0.0, %v319
    %321 = vdwg.mxu0
    %v322 = vadd.f32 %v244, %v311
    %v323 = vadd.f32 %v245, %v314
    %v324 = vadd.f32 %v246, %v317
    %v325 = vadd.f32 %v247, %v320
    %v326 = vmax.f32 %v322, %v323
    %v327 = vrot.slane %v326, 4
    %v328 = vmax.f32 %v326, %v327
    %v329 = vrot.slane %v328, 2
    %v330 = vmax.f32 %v328, %v329
    %v331 = vrot.slane %v330, 1
    %v332 = vmax.f32 %v330, %v331
    %v333 = vmax.f32 %v324, %v325
    %v334 = vrot.slane %v333, 4
    %v335 = vmax.f32 %v333, %v334
    %v336 = vrot.slane %v335, 2
    %v337 = vmax.f32 %v335, %v336
    %v338 = vrot.slane %v337, 1
    %v339 = vmax.f32 %v337, %v338
    %v340 = vld [vmem:[%s2] sm:$0x1]
    %v342 = vperm.slane %v340, 0
    %v344 = vadd.f32 %v332, %v342
    %v345 = vadd.f32 %v339, %v342
    %v346 = vmax.f32 %v344, 0.0
    %v347 = vmax.f32 %v345, 0.0
    %v350 = vrot.slane %v347, 7
    %vm351 = vcmask 1041409
    %v352 = vsel %vm351, %v350, %v346
    %354 = vst [vmem:[#allocation2] sm:$0x3] %v352
    // Predicated region
    $region14: #{forward.1} parent=1 // pred_check
      _
    $region15: #{forward.1} parent=1 // pred_check_branch
      %356 = sbr.rel (0) target = $region17
    $region16: #{forward.1} parent=1 // pred_region
      %358 = vsyncadd [#allocation3], 0
      %s360 = sshll.u32 [#allocation2], 4
      %s361 = int_to_ptr.vmem [resolvable:$true] %s360
      %s362 = sshll.u32 %s3, 4
      %s363 = int_to_ptr.hbm [resolvable:$true] %s362
      %365 = dma.vmem_to_hbm [thread:$0]  %s361, 32, %s363, [#allocation3]
    $region17: #{forward.1} parent=1 // pred_fallthru
      _
    // Predicated region
    $region18: #{forward.1} parent=1 // pred_check
      _
    $region19: #{forward.1} parent=1 // pred_check_branch
      %367 = sbr.rel (0) target = $region21
    $region20: #{forward.1} parent=1 // pred_region
      %369 = dma.done [#allocation3], 32
    $region21: #{forward.1} parent=1 // pred_fallthru
      _
    %370 = vsyncpa [#allocation3], 1

</llo_original>
